<compile_context>
chip_gen: v5e
topology: v5e:2x2
jax: 0.10.0
libtpu: 0.0.40
codegen_flags: <defaults>
</compile_context>

<pallas_src>
import functools

import jax
import jax.numpy as jnp
from jax import lax
from jax.experimental import pallas as pl
from jax.experimental.pallas import tpu as pltpu

SINKHORN_ITERS = 5  # Sinkhorn(5)


def _cross_attn_head_kernel(q_ref, kt_ref, v_ref, m_ref, y_ref, *, sinkhorn_iters):
    """One (batch, head) block: q (Lq, d_k), kT (d_k, Lk), v (Lk, d_v)."""
    # Scores.  The hidden_size**-0.5 scale is folded into the Q projection and
    # K arrives pre-transposed, so this is one canonical MXU matmul
    # (bf16 inputs, f32 accumulation).
    s = jnp.dot(q_ref[...], kt_ref[...],
                preferred_element_type=jnp.float32)          # (Lq, Lk) f32
    # TODO(synk): attn_bias (module default None) would be added to `s` here.
    x = jax.nn.sigmoid(s)                                    # f32

    lq, lk = x.shape

    # Sinkhorn in scaling-vector form: keep x fixed and iterate
    #   u = 1 / (x @ v)        (row normalization)
    #   v = 1 / (u^T @ x)      (column normalization, applied last)
    # Each step is two MXU matvecs; reciprocals are exact (tiny vectors), so
    # the approx-reciprocal error-compounding concern does not apply.
    v_init = jnp.ones((1, lk), jnp.float32)

    def body(_, carry):
        _, v_cur = carry
        # u as a (1, Lq) row vector: 1 / (x @ v_cur^T)  (rhs-transposed pattern,
        # same contraction class as flash-attention's q @ k^T).
        u_row = 1.0 / lax.dot_general(
            v_cur, x, (((1,), (1,)), ((), ())),
            preferred_element_type=jnp.float32)              # (1, Lq)
        # v update: 1 / (u^T @ x), fully canonical matvec.
        v_new = 1.0 / lax.dot_general(
            u_row, x, (((1,), (0,)), ((), ())),
            preferred_element_type=jnp.float32)              # (1, Lk)
        return v_cur, v_new

    v_prev, v_fin = lax.fori_loop(0, sinkhorn_iters, body, (v_init, v_init),
                                  unroll=True)
    # Final row scaling recomputed in column layout: u_K = 1 / (x @ v_{K-1}).
    u_col = 1.0 / lax.dot_general(
        x, v_prev, (((1,), (1,)), ((), ())),
        preferred_element_type=jnp.float32)                  # (Lq, 1)

    # Doubly-normalized map: m = diag(u) * x * diag(v) — two broadcast muls.
    m = (x * v_fin) * u_col                                  # (Lq, Lk) f32
    m_ref[...] = m.astype(m_ref.dtype)

    # Attention dropout == identity (eval mode).  y_h = m @ v_h (bf16 MXU).
    y_ref[...] = jnp.dot(m.astype(v_ref.dtype), v_ref[...],
                         preferred_element_type=jnp.float32).astype(y_ref.dtype)


def _padded_tile_bytes(shape2d, dtype):
    """VMEM footprint of a 2-D block after (8, 128) tile padding."""
    r, c = shape2d
    r = -(-r // 8) * 8
    c = -(-c // 128) * 128
    return r * c * jnp.dtype(dtype).itemsize


def cross_attention_core(qh, khT, vh, *, m_dtype=jnp.float32,
                         sinkhorn_iters=SINKHORN_ITERS):
    """qh: (B,H,Lq,d_k), khT: (B,H,d_k,Lk), vh: (B,H,Lk,d_v) — head-major."""
    B, H, Lq, d_k = qh.shape
    Lk = khT.shape[-1]
    d_v = vh.shape[-1]

    sq = pl.Squeezed()
    kernel = functools.partial(_cross_attn_head_kernel,
                               sinkhorn_iters=sinkhorn_iters)

    # Explicit VMEM budget: double-buffered pipeline blocks (q, kT, v, m, y)
    # + in-kernel f32 temporaries (x, m) + headroom, capped below the physical
    # per-core VMEM (64 MiB on v7x, 128 MiB on v5e/v6e).
    blocks = (_padded_tile_bytes((Lq, d_k), qh.dtype)
              + _padded_tile_bytes((d_k, Lk), khT.dtype)
              + _padded_tile_bytes((Lk, d_v), vh.dtype)
              + _padded_tile_bytes((Lq, Lk), m_dtype)
              + _padded_tile_bytes((Lq, d_v), jnp.float32))
    temporaries = 2 * _padded_tile_bytes((Lq, Lk), jnp.float32)
    vmem_limit = 2 * blocks + temporaries + (8 << 20)
    try:
        vmem_cap = pltpu.get_tpu_info().vmem_capacity_bytes
    except Exception:  # conservative fallback = v7x per-core VMEM
        vmem_cap = 64 << 20
    vmem_limit = int(min(vmem_limit, int(0.9 * vmem_cap)))

    # Advisory cost estimate so XLA schedules the surrounding projections
    # around the kernel.
    mm_flops = 2 * B * H * Lq * Lk * (d_k + d_v)
    sinkhorn_flops = B * H * sinkhorn_iters * 2 * 2 * Lq * Lk
    bytes_accessed = (qh.size * qh.dtype.itemsize
                      + khT.size * khT.dtype.itemsize
                      + vh.size * vh.dtype.itemsize
                      + B * H * Lq * Lk * jnp.dtype(m_dtype).itemsize
                      + B * H * Lq * d_v * 4)
    cost = pl.CostEstimate(flops=int(mm_flops + sinkhorn_flops),
                           transcendentals=int(B * H * Lq * Lk),
                           bytes_accessed=int(bytes_accessed))

    m, y = pl.pallas_call(
        kernel,
        out_shape=(
            jax.ShapeDtypeStruct((B, H, Lq, Lk), m_dtype),
            jax.ShapeDtypeStruct((B, H, Lq, d_v), jnp.float32),
        ),
        grid=(B, H),
        in_specs=[
            pl.BlockSpec((sq, sq, Lq, d_k), lambda b, h: (b, h, 0, 0)),
            pl.BlockSpec((sq, sq, d_k, Lk), lambda b, h: (b, h, 0, 0)),
            pl.BlockSpec((sq, sq, Lk, d_v), lambda b, h: (b, h, 0, 0)),
        ],
        out_specs=(
            pl.BlockSpec((sq, sq, Lq, Lk), lambda b, h: (b, h, 0, 0)),
            pl.BlockSpec((sq, sq, Lq, d_v), lambda b, h: (b, h, 0, 0)),
        ),
        compiler_params=pltpu.CompilerParams(
            # No block is revisited across either axis → both axes parallel
            # (both v7x TensorCores busy even at B == 1; no-op on v5e/v6e).
            dimension_semantics=("parallel", "parallel"),
            vmem_limit_bytes=vmem_limit,
        ),
        cost_estimate=cost,
    )(qh, khT, vh)
    return m, y


def init_params(key, hidden_size, head_size):
    """Deterministic init mimicking nn.Linear default (uniform +-1/sqrt(fan_in))."""
    att_size = hidden_size // head_size
    keys = jax.random.split(key, 8)

    def lin(kw, kb, fan_in, fan_out):
        bound = 1.0 / (fan_in ** 0.5)
        w = jax.random.uniform(kw, (fan_in, fan_out), jnp.float32, -bound, bound)
        b = jax.random.uniform(kb, (fan_out,), jnp.float32, -bound, bound)
        return w, b

    wq, bq = lin(keys[0], keys[1], hidden_size, head_size * att_size)
    wk, bk = lin(keys[2], keys[3], hidden_size, head_size * att_size)
    wv, bv = lin(keys[4], keys[5], hidden_size, head_size * att_size)
    wo, bo = lin(keys[6], keys[7], head_size * att_size, hidden_size)
    return dict(wq=wq, bq=bq, wk=wk, bk=bk, wv=wv, bv=bv, wo=wo, bo=bo)


def cross_attention_forward(params, q, k, v, *, hidden_size, head_size,
                            attn_bias=None, compute_dtype=jnp.bfloat16,
                            m_dtype=jnp.float32):
    # TODO(synk): attn_bias is assumed None (module default); if needed, add it
    #             to the scores before the sigmoid inside the kernel.
    att_size = hidden_size // head_size
    scale = hidden_size ** (-0.5)  # matches the module: hidden_size ** -0.5

    # Fold the score scale into the Q projection (module scales after the full
    # linear, i.e. (xW + b) * scale, so both W and b are scaled).
    wq = params["wq"] * scale
    bq = params["bq"] * scale

    # Q/K/V projections.
    qp = q @ wq + bq
    kp = k @ params["wk"] + params["bk"]
    vp = v @ params["wv"] + params["bv"]

    B, Lq, _ = qp.shape
    Lk = kp.shape[1]
    H, d = head_size, att_size

    # Head-major layouts for the (batch, head) grid.  K is pre-transposed to
    # (B, H, d_k, Lk) so the in-kernel score matmul needs no relayout.  bf16
    # halves q/k/v HBM->VMEM traffic and runs the MXU at native bf16 rate
    # (accumulation + sigmoid + Sinkhorn stay f32).
    qh = qp.reshape(B, Lq, H, d).transpose(0, 2, 1, 3).astype(compute_dtype)   # (B,H,Lq,d)
    khT = kp.reshape(B, Lk, H, d).transpose(0, 2, 3, 1).astype(compute_dtype)  # (B,H,d,Lk)
    vh = vp.reshape(B, Lk, H, d).transpose(0, 2, 1, 3).astype(compute_dtype)   # (B,H,Lk,d)

    # Hot path (scores, sigmoid, Sinkhorn, attention @ V) in Pallas.
    m, yh = cross_attention_core(qh, khT, vh, m_dtype=m_dtype)

    # (B, H, Lq, d_v) -> (B, Lq, H*d_v), then output projection.
    y = yh.transpose(0, 2, 1, 3).reshape(B, Lq, H * d)
    y = y @ params["wo"] + params["bo"]
    return m, y


if __name__ == "__main__":
    hidden_size = 32
    head_size = 4
    batch = 2
    seq_q = 8
    seq_k = 8

    key = jax.random.PRNGKey(0)
    k_params, k_q, k_k, k_v = jax.random.split(key, 4)

    params = init_params(k_params, hidden_size, head_size)
    q = jax.random.normal(k_q, (batch, seq_q, hidden_size), jnp.float32)
    k = jax.random.normal(k_k, (batch, seq_k, hidden_size), jnp.float32)
    v = jax.random.normal(k_v, (batch, seq_k, hidden_size), jnp.float32)

    m, y = cross_attention_forward(
        params, q, k, v, hidden_size=hidden_size, head_size=head_size
    )
    jax.block_until_ready((m, y))

    assert m.shape == (batch, head_size, seq_q, seq_k)
    assert m.dtype == jnp.float32
    assert y.shape == q.shape
    print("KERNEL_OK")
</pallas_src>

<mosaic_0001>
module attributes {stable_mosaic.version = 11 : i64} {
  func.func @_cross_attn_head_kernel(%arg0: i32, %arg1: i32, %arg2: memref<1x1x8x8xbf16, #tpu.memory_space<vmem>>, %arg3: memref<1x1x8x8xbf16, #tpu.memory_space<vmem>>, %arg4: memref<1x1x8x8xbf16, #tpu.memory_space<vmem>>, %arg5: memref<1x1x8x8xf32, #tpu.memory_space<vmem>>, %arg6: memref<1x1x8x8xf32, #tpu.memory_space<vmem>>) attributes {dimension_semantics = [#tpu.dimension_semantics<parallel>, #tpu.dimension_semantics<parallel>], iteration_bounds = array<i64: 2, 4>, scalar_prefetch = 0 : i64, scratch_operands = 0 : i64, tpu.core_type = #tpu.core_type<tc>, window_params = [{transform_indices = @transform_0, window_bounds = array<i64: 1, 1, 8, 8>}, {transform_indices = @transform_1, window_bounds = array<i64: 1, 1, 8, 8>}, {transform_indices = @transform_2, window_bounds = array<i64: 1, 1, 8, 8>}, {transform_indices = @transform_3, window_bounds = array<i64: 1, 1, 8, 8>}, {transform_indices = @transform_4, window_bounds = array<i64: 1, 1, 8, 8>}]} {
    %c0 = arith.constant 0 : index
    %c0_0 = arith.constant 0 : index
    %c0_1 = arith.constant 0 : index
    %c0_2 = arith.constant 0 : index
    %0 = vector.load %arg2[%c0, %c0_0, %c0_1, %c0_2] : memref<1x1x8x8xbf16, #tpu.memory_space<vmem>>, vector<1x1x8x8xbf16>
    %1 = vector.shape_cast %0 : vector<1x1x8x8xbf16> to vector<8x8xbf16>
    %c0_3 = arith.constant 0 : index
    %c0_4 = arith.constant 0 : index
    %c0_5 = arith.constant 0 : index
    %c0_6 = arith.constant 0 : index
    %2 = vector.load %arg3[%c0_3, %c0_4, %c0_5, %c0_6] : memref<1x1x8x8xbf16, #tpu.memory_space<vmem>>, vector<1x1x8x8xbf16>
    %3 = vector.shape_cast %2 : vector<1x1x8x8xbf16> to vector<8x8xbf16>
    %cst = arith.constant dense<0.000000e+00> : vector<8x8xf32>
    %4 = tpu.matmul %1, %3, %cst {dimension_numbers = #tpu.dot_dimension_numbers<[1], [0], [0], [1], [0, 0, 1, 1], [], []>} : vector<8x8xbf16>, vector<8x8xbf16>, vector<8x8xf32> -> vector<8x8xf32>
    %5 = arith.negf %4 : vector<8x8xf32>
    %6 = math.exp %5 : vector<8x8xf32>
    %cst_7 = arith.constant 1.000000e+00 : f32
    %7 = vector.broadcast %cst_7 : f32 to vector<8x8xf32>
    %8 = arith.addf %7, %6 : vector<8x8xf32>
    %9 = arith.divf %7, %8 : vector<8x8xf32>
    %cst_8 = arith.constant 1.000000e+00 : f32
    %10 = vector.broadcast %cst_8 : f32 to vector<1x8xf32>
    %c0_i32 = arith.constant 0 : i32
    %cst_9 = arith.constant dense<0.000000e+00> : vector<1x8xf32>
    %11 = tpu.matmul %10, %9, %cst_9 {dimension_numbers = #tpu.dot_dimension_numbers<[1], [1], [0], [0], [0, 0, 1, 0], [], []>} : vector<1x8xf32>, vector<8x8xf32>, vector<1x8xf32> -> vector<1x8xf32>
    %cst_10 = arith.constant 1.000000e+00 : f32
    %12 = vector.broadcast %cst_10 : f32 to vector<1x8xf32>
    %13 = arith.divf %12, %11 : vector<1x8xf32>
    %cst_11 = arith.constant dense<0.000000e+00> : vector<1x8xf32>
    %14 = tpu.matmul %13, %9, %cst_11 {dimension_numbers = #tpu.dot_dimension_numbers<[1], [0], [0], [1], [0, 0, 1, 1], [], []>} : vector<1x8xf32>, vector<8x8xf32>, vector<1x8xf32> -> vector<1x8xf32>
    %cst_12 = arith.constant 1.000000e+00 : f32
    %15 = vector.broadcast %cst_12 : f32 to vector<1x8xf32>
    %16 = arith.divf %15, %14 : vector<1x8xf32>
    %c1_i32 = arith.constant 1 : i32
    %cst_13 = arith.constant dense<0.000000e+00> : vector<1x8xf32>
    %17 = tpu.matmul %16, %9, %cst_13 {dimension_numbers = #tpu.dot_dimension_numbers<[1], [1], [0], [0], [0, 0, 1, 0], [], []>} : vector<1x8xf32>, vector<8x8xf32>, vector<1x8xf32> -> vector<1x8xf32>
    %cst_14 = arith.constant 1.000000e+00 : f32
    %18 = vector.broadcast %cst_14 : f32 to vector<1x8xf32>
    %19 = arith.divf %18, %17 : vector<1x8xf32>
    %cst_15 = arith.constant dense<0.000000e+00> : vector<1x8xf32>
    %20 = tpu.matmul %19, %9, %cst_15 {dimension_numbers = #tpu.dot_dimension_numbers<[1], [0], [0], [1], [0, 0, 1, 1], [], []>} : vector<1x8xf32>, vector<8x8xf32>, vector<1x8xf32> -> vector<1x8xf32>
    %cst_16 = arith.constant 1.000000e+00 : f32
    %21 = vector.broadcast %cst_16 : f32 to vector<1x8xf32>
    %22 = arith.divf %21, %20 : vector<1x8xf32>
    %c2_i32 = arith.constant 2 : i32
    %cst_17 = arith.constant dense<0.000000e+00> : vector<1x8xf32>
    %23 = tpu.matmul %22, %9, %cst_17 {dimension_numbers = #tpu.dot_dimension_numbers<[1], [1], [0], [0], [0, 0, 1, 0], [], []>} : vector<1x8xf32>, vector<8x8xf32>, vector<1x8xf32> -> vector<1x8xf32>
    %cst_18 = arith.constant 1.000000e+00 : f32
    %24 = vector.broadcast %cst_18 : f32 to vector<1x8xf32>
    %25 = arith.divf %24, %23 : vector<1x8xf32>
    %cst_19 = arith.constant dense<0.000000e+00> : vector<1x8xf32>
    %26 = tpu.matmul %25, %9, %cst_19 {dimension_numbers = #tpu.dot_dimension_numbers<[1], [0], [0], [1], [0, 0, 1, 1], [], []>} : vector<1x8xf32>, vector<8x8xf32>, vector<1x8xf32> -> vector<1x8xf32>
    %cst_20 = arith.constant 1.000000e+00 : f32
    %27 = vector.broadcast %cst_20 : f32 to vector<1x8xf32>
    %28 = arith.divf %27, %26 : vector<1x8xf32>
    %c3_i32 = arith.constant 3 : i32
    %cst_21 = arith.constant dense<0.000000e+00> : vector<1x8xf32>
    %29 = tpu.matmul %28, %9, %cst_21 {dimension_numbers = #tpu.dot_dimension_numbers<[1], [1], [0], [0], [0, 0, 1, 0], [], []>} : vector<1x8xf32>, vector<8x8xf32>, vector<1x8xf32> -> vector<1x8xf32>
    %cst_22 = arith.constant 1.000000e+00 : f32
    %30 = vector.broadcast %cst_22 : f32 to vector<1x8xf32>
    %31 = arith.divf %30, %29 : vector<1x8xf32>
    %cst_23 = arith.constant dense<0.000000e+00> : vector<1x8xf32>
    %32 = tpu.matmul %31, %9, %cst_23 {dimension_numbers = #tpu.dot_dimension_numbers<[1], [0], [0], [1], [0, 0, 1, 1], [], []>} : vector<1x8xf32>, vector<8x8xf32>, vector<1x8xf32> -> vector<1x8xf32>
    %cst_24 = arith.constant 1.000000e+00 : f32
    %33 = vector.broadcast %cst_24 : f32 to vector<1x8xf32>
    %34 = arith.divf %33, %32 : vector<1x8xf32>
    %c4_i32 = arith.constant 4 : i32
    %cst_25 = arith.constant dense<0.000000e+00> : vector<1x8xf32>
    %35 = tpu.matmul %34, %9, %cst_25 {dimension_numbers = #tpu.dot_dimension_numbers<[1], [1], [0], [0], [0, 0, 1, 0], [], []>} : vector<1x8xf32>, vector<8x8xf32>, vector<1x8xf32> -> vector<1x8xf32>
    %cst_26 = arith.constant 1.000000e+00 : f32
    %36 = vector.broadcast %cst_26 : f32 to vector<1x8xf32>
    %37 = arith.divf %36, %35 : vector<1x8xf32>
    %cst_27 = arith.constant dense<0.000000e+00> : vector<1x8xf32>
    %38 = tpu.matmul %37, %9, %cst_27 {dimension_numbers = #tpu.dot_dimension_numbers<[1], [0], [0], [1], [0, 0, 1, 1], [], []>} : vector<1x8xf32>, vector<8x8xf32>, vector<1x8xf32> -> vector<1x8xf32>
    %cst_28 = arith.constant 1.000000e+00 : f32
    %39 = vector.broadcast %cst_28 : f32 to vector<1x8xf32>
    %40 = arith.divf %39, %38 : vector<1x8xf32>
    %cst_29 = arith.constant dense<0.000000e+00> : vector<8x1xf32>
    %41 = tpu.matmul %9, %34, %cst_29 {dimension_numbers = #tpu.dot_dimension_numbers<[1], [1], [0], [0], [0, 0, 1, 0], [], []>} : vector<8x8xf32>, vector<1x8xf32>, vector<8x1xf32> -> vector<8x1xf32>
    %cst_30 = arith.constant 1.000000e+00 : f32
    %42 = vector.broadcast %cst_30 : f32 to vector<8x1xf32>
    %43 = arith.divf %42, %41 : vector<8x1xf32>
    %44 = vector.broadcast %40 : vector<1x8xf32> to vector<8x8xf32>
    %45 = arith.mulf %9, %44 : vector<8x8xf32>
    %46 = vector.broadcast %43 : vector<8x1xf32> to vector<8x8xf32>
    %47 = arith.mulf %45, %46 : vector<8x8xf32>
    %c0_31 = arith.constant 0 : index
    %c0_32 = arith.constant 0 : index
    %c0_33 = arith.constant 0 : index
    %c0_34 = arith.constant 0 : index
    %48 = vector.load %arg5[%c0_31, %c0_32, %c0_33, %c0_34] : memref<1x1x8x8xf32, #tpu.memory_space<vmem>>, vector<1x1x8x8xf32>
    %49 = vector.shape_cast %48 : vector<1x1x8x8xf32> to vector<8x8xf32>
    %50 = vector.shape_cast %47 : vector<8x8xf32> to vector<1x1x8x8xf32>
    tpu.vector_store %arg5[%c0_31, %c0_32, %c0_33, %c0_34], %50 {strides = array<i32>} : memref<1x1x8x8xf32, #tpu.memory_space<vmem>>, vector<1x1x8x8xf32>,
    %51 = arith.truncf %47 : vector<8x8xf32> to vector<8x8xbf16>
    %c0_35 = arith.constant 0 : index
    %c0_36 = arith.constant 0 : index
    %c0_37 = arith.constant 0 : index
    %c0_38 = arith.constant 0 : index
    %52 = vector.load %arg4[%c0_35, %c0_36, %c0_37, %c0_38] : memref<1x1x8x8xbf16, #tpu.memory_space<vmem>>, vector<1x1x8x8xbf16>
    %53 = vector.shape_cast %52 : vector<1x1x8x8xbf16> to vector<8x8xbf16>
    %cst_39 = arith.constant dense<0.000000e+00> : vector<8x8xf32>
    %54 = tpu.matmul %51, %53, %cst_39 {dimension_numbers = #tpu.dot_dimension_numbers<[1], [0], [0], [1], [0, 0, 1, 1], [], []>} : vector<8x8xbf16>, vector<8x8xbf16>, vector<8x8xf32> -> vector<8x8xf32>
    %c0_40 = arith.constant 0 : index
    %c0_41 = arith.constant 0 : index
    %c0_42 = arith.constant 0 : index
    %c0_43 = arith.constant 0 : index
    %55 = vector.load %arg6[%c0_40, %c0_41, %c0_42, %c0_43] : memref<1x1x8x8xf32, #tpu.memory_space<vmem>>, vector<1x1x8x8xf32>
    %56 = vector.shape_cast %55 : vector<1x1x8x8xf32> to vector<8x8xf32>
    %57 = vector.shape_cast %54 : vector<8x8xf32> to vector<1x1x8x8xf32>
    tpu.vector_store %arg6[%c0_40, %c0_41, %c0_42, %c0_43], %57 {strides = array<i32>} : memref<1x1x8x8xf32, #tpu.memory_space<vmem>>, vector<1x1x8x8xf32>,
    return
  }
  func.func @transform_0(%arg0: i32, %arg1: i32) -> (i32, i32, i32, i32) {
    %c0_i32 = arith.constant 0 : i32
    %c0_i32_0 = arith.constant 0 : i32
    %c0_i32_1 = arith.constant 0 : i32
    return %arg0, %arg1, %c0_i32, %c0_i32_0 : i32, i32, i32, i32
  }
  func.func @transform_1(%arg0: i32, %arg1: i32) -> (i32, i32, i32, i32) {
    %c0_i32 = arith.constant 0 : i32
    %c0_i32_0 = arith.constant 0 : i32
    %c0_i32_1 = arith.constant 0 : i32
    return %arg0, %arg1, %c0_i32, %c0_i32_0 : i32, i32, i32, i32
  }
  func.func @transform_2(%arg0: i32, %arg1: i32) -> (i32, i32, i32, i32) {
    %c0_i32 = arith.constant 0 : i32
    %c0_i32_0 = arith.constant 0 : i32
    %c0_i32_1 = arith.constant 0 : i32
    return %arg0, %arg1, %c0_i32, %c0_i32_0 : i32, i32, i32, i32
  }
  func.func @transform_3(%arg0: i32, %arg1: i32) -> (i32, i32, i32, i32) {
    %c0_i32 = arith.constant 0 : i32
    %c0_i32_0 = arith.constant 0 : i32
    %c0_i32_1 = arith.constant 0 : i32
    return %arg0, %arg1, %c0_i32, %c0_i32_0 : i32, i32, i32, i32
  }
  func.func @transform_4(%arg0: i32, %arg1: i32) -> (i32, i32, i32, i32) {
    %c0_i32 = arith.constant 0 : i32
    %c0_i32_0 = arith.constant 0 : i32
    %c0_i32_1 = arith.constant 0 : i32
    return %arg0, %arg1, %c0_i32, %c0_i32_0 : i32, i32, i32, i32
  }
}

</mosaic_0001>

<llo_original>
// kernel: tpu_custom_call.1
$region0: #{tpu_custom_call.1}
  #allocation0 [shape = 'u32[]', space=smem, size = 0x4, offset = 0x4, fixed_abs, tag = 'smem constant byte address 0x4 - core index']
  #allocation1 [shape = 'u32[72,128]{1,0:T(1,128)}', space=vmem, size = 0x9000, scoped, tag = 'internal scratch']
  %s0 = inlined_call_operand.hbm [shape: bf16[2,4,8,8], index: 0, kind: input, shape index: {}]
  %s1 = inlined_call_operand.hbm [shape: bf16[2,4,8,8], index: 1, kind: input, shape index: {}]
  %s2 = inlined_call_operand.hbm [shape: bf16[2,4,8,8], index: 2, kind: input, shape index: {}]
  %s3 = inlined_call_operand.hbm [shape: f32[2,4,8,8], index: 3, kind: output, shape index: {0}]
  %s4 = inlined_call_operand.hbm [shape: f32[2,4,8,8], index: 4, kind: output, shape index: {1}]
  %5 = xla_tuple %s3, %s4
  %s6 = sld [smem:[#allocation0]]
  $region65: #{tpu_custom_call.1} parent=0
    _
  %s8 = ssub.s32 1, %s6
  %s9 = scalar_select 0, %s8, %s6
  $region1: #{tpu_custom_call.1} parent=0
    #allocation2 [shape = 'u8[4096]{0}', space=vmem, size = 0x1000, scoped, tag = 'input window, operand 0']
    #allocation3 [shape = 's32[2]{0}', space=sflag, size = 0x8, scoped, tag = 'scoped memory for tpu_custom_call.1']
    #allocation4 [shape = 's32[2]{0}', space=sflag, size = 0x8, scoped, tag = 'scoped memory for tpu_custom_call.1']
    #allocation5 [shape = 'u8[4096]{0}', space=vmem, size = 0x1000, scoped, tag = 'input window, operand 1']
    #allocation6 [shape = 's32[2]{0}', space=sflag, size = 0x8, scoped, tag = 'scoped memory for tpu_custom_call.1']
    #allocation7 [shape = 'u8[4096]{0}', space=vmem, size = 0x1000, scoped, tag = 'input window, operand 2']
    #allocation8 [shape = 'u8[8192]{0}', space=vmem, size = 0x2000, scoped, tag = 'output window, operand 0']
    #allocation9 [shape = 'u8[8192]{0}', space=vmem, size = 0x2000, scoped, tag = 'output window, operand 1']
    #allocation10 [shape = 's32[2]{0}', space=sflag, size = 0x8, scoped, tag = 'scoped memory for tpu_custom_call.1']
    %10 = vsyncpa [#allocation3], 0
    %s11 = scalar_lea.sflag [#allocation3], 1
    %12 = vsyncpa %s11, 0
    %13 = vsyncpa [#allocation6], 0
    %s14 = scalar_lea.sflag [#allocation6], 1
    %15 = vsyncpa %s14, 0
    %16 = vsyncpa [#allocation4], 0
    %s17 = scalar_lea.sflag [#allocation4], 1
    %18 = vsyncpa %s17, 0
    %19 = vsyncpa [#allocation10], 0
    %s20 = scalar_lea.sflag [#allocation10], 1
    %21 = vsyncpa %s20, 0
    loop: start=0, step=1, limit=10
    $region2: #{tpu_custom_call.1} parent=1 // loop_pre_header
      _
    $region3: #{tpu_custom_call.1} parent=1 // loop_header
      %s23 = sphi 0, %s27
      %p24 = scmp.ge.s32.totalorder %s23, 10
      %s30 = sphi 0, %s42
      %s31 = sphi 0, %s38
      %s32 = sphi 0, %s30
      %s33 = sphi 0, %s31
      %s34 = sphi 0, %s32
      %s35 = sphi 0, %s33
      %s47 = sphi 0, %s49
      %s50 = sphi 0, %s47
      %s51 = sphi 0, %s50
      %s67 = sphi 0, %s51
      %s75 = sphi 0, %s77
      %s78 = sphi 0, %s75
      %s79 = sphi 0, %s78
      %s95 = sphi 0, %s79
      %s103 = sphi 0, %s105
      %s106 = sphi 0, %s103
      %s107 = sphi 0, %s106
      %s123 = sphi 0, %s107
      %s131 = sphi 0, %s133
      %s134 = sphi 0, %s131
      %s135 = sphi 0, %s134
      %s151 = sphi 0, %s135
      %s159 = sphi 0, %s161
      %s162 = sphi 0, %s159
      %s163 = sphi 0, %s162
      %s179 = sphi 0, %s163
    $region4: #{tpu_custom_call.1} parent=1 // loop_header_branch
      %26 = sbr.rel (%p24) target = $region8
    $region5: #{tpu_custom_call.1} parent=1 // loop_body
      %s28 = ssub.s32 %s23, 1
      %s29 = ssub.s32 %s23, 2
      %s36 = sadd.s32 1, %s31
      %p37 = scmp.ge.s32.totalorder %s36, 4
      %s38 = scalar_select %p37, 0, %s36
      %s39 = sadd.s32 1, %s30
      %s40 = scalar_select %p37, %s39, %s30
      %p41 = scmp.ge.s32.totalorder %s40, 2
      %s42 = scalar_select %p41, 0, %s40
      %s43 = ssub.s32 %s30, %s42
      %s44 = ssub.s32 %s31, %s38
      %s45 = sor.u32 %s43, %s44
      %p46 = scmp.eq.s32.totalorder %s45, 0
      %s48 = sadd.s32 %s47, 1
      %s49 = scalar_select %p46, %s47, %s48
      %p52 = pneg %p46
      %p53 = scmp.eq.s32.totalorder %s23, 7
      %p54 = por %p52, %p53
      %p55 = scmp.ne.s32.totalorder %s47, %s50
      %p56 = scmp.eq.s32.totalorder %s23, 0
      %p57 = por %p55, %p56
      %p58 = scmp.ne.s32.totalorder %s47, %s50
      %p59 = scmp.eq.s32.totalorder %s28, 7
      %p60 = por %p58, %p59
      %p61 = scmp.ne.s32.totalorder %s50, %s51
      %p62 = scmp.eq.s32.totalorder %s28, 0
      %p63 = por %p61, %p62
      %p64 = scmp.ne.s32.totalorder %s50, %s51
      %p65 = scmp.eq.s32.totalorder %s29, 7
      %p66 = por %p64, %p65
      %p68 = scmp.ne.s32.totalorder %s51, %s67
      %p69 = scmp.eq.s32.totalorder %s29, 0
      %p70 = por %p68, %p69
      %s71 = ssub.s32 %s30, %s42
      %s72 = ssub.s32 %s31, %s38
      %s73 = sor.u32 %s71, %s72
      %p74 = scmp.eq.s32.totalorder %s73, 0
      %s76 = sadd.s32 %s75, 1
      %s77 = scalar_select %p74, %s75, %s76
      %p80 = pneg %p74
      %p81 = scmp.eq.s32.totalorder %s23, 7
      %p82 = por %p80, %p81
      %p83 = scmp.ne.s32.totalorder %s75, %s78
      %p84 = scmp.eq.s32.totalorder %s23, 0
      %p85 = por %p83, %p84
      %p86 = scmp.ne.s32.totalorder %s75, %s78
      %p87 = scmp.eq.s32.totalorder %s28, 7
      %p88 = por %p86, %p87
      %p89 = scmp.ne.s32.totalorder %s78, %s79
      %p90 = scmp.eq.s32.totalorder %s28, 0
      %p91 = por %p89, %p90
      %p92 = scmp.ne.s32.totalorder %s78, %s79
      %p93 = scmp.eq.s32.totalorder %s29, 7
      %p94 = por %p92, %p93
      %p96 = scmp.ne.s32.totalorder %s79, %s95
      %p97 = scmp.eq.s32.totalorder %s29, 0
      %p98 = por %p96, %p97
      %s99 = ssub.s32 %s30, %s42
      %s100 = ssub.s32 %s31, %s38
      %s101 = sor.u32 %s99, %s100
      %p102 = scmp.eq.s32.totalorder %s101, 0
      %s104 = sadd.s32 %s103, 1
      %s105 = scalar_select %p102, %s103, %s104
      %p108 = pneg %p102
      %p109 = scmp.eq.s32.totalorder %s23, 7
      %p110 = por %p108, %p109
      %p111 = scmp.ne.s32.totalorder %s103, %s106
      %p112 = scmp.eq.s32.totalorder %s23, 0
      %p113 = por %p111, %p112
      %p114 = scmp.ne.s32.totalorder %s103, %s106
      %p115 = scmp.eq.s32.totalorder %s28, 7
      %p116 = por %p114, %p115
      %p117 = scmp.ne.s32.totalorder %s106, %s107
      %p118 = scmp.eq.s32.totalorder %s28, 0
      %p119 = por %p117, %p118
      %p120 = scmp.ne.s32.totalorder %s106, %s107
      %p121 = scmp.eq.s32.totalorder %s29, 7
      %p122 = por %p120, %p121
      %p124 = scmp.ne.s32.totalorder %s107, %s123
      %p125 = scmp.eq.s32.totalorder %s29, 0
      %p126 = por %p124, %p125
      %s127 = ssub.s32 %s30, %s42
      %s128 = ssub.s32 %s31, %s38
      %s129 = sor.u32 %s127, %s128
      %p130 = scmp.eq.s32.totalorder %s129, 0
      %s132 = sadd.s32 %s131, 1
      %s133 = scalar_select %p130, %s131, %s132
      %p136 = pneg %p130
      %p137 = scmp.eq.s32.totalorder %s23, 7
      %p138 = por %p136, %p137
      %p139 = scmp.ne.s32.totalorder %s131, %s134
      %p140 = scmp.eq.s32.totalorder %s23, 0
      %p141 = por %p139, %p140
      %p142 = scmp.ne.s32.totalorder %s131, %s134
      %p143 = scmp.eq.s32.totalorder %s28, 7
      %p144 = por %p142, %p143
      %p145 = scmp.ne.s32.totalorder %s134, %s135
      %p146 = scmp.eq.s32.totalorder %s28, 0
      %p147 = por %p145, %p146
      %p148 = scmp.ne.s32.totalorder %s134, %s135
      %p149 = scmp.eq.s32.totalorder %s29, 7
      %p150 = por %p148, %p149
      %p152 = scmp.ne.s32.totalorder %s135, %s151
      %p153 = scmp.eq.s32.totalorder %s29, 0
      %p154 = por %p152, %p153
      %s155 = ssub.s32 %s30, %s42
      %s156 = ssub.s32 %s31, %s38
      %s157 = sor.u32 %s155, %s156
      %p158 = scmp.eq.s32.totalorder %s157, 0
      %s160 = sadd.s32 %s159, 1
      %s161 = scalar_select %p158, %s159, %s160
      %p164 = pneg %p158
      %p165 = scmp.eq.s32.totalorder %s23, 7
      %p166 = por %p164, %p165
      %p167 = scmp.ne.s32.totalorder %s159, %s162
      %p168 = scmp.eq.s32.totalorder %s23, 0
      %p169 = por %p167, %p168
      %p170 = scmp.ne.s32.totalorder %s159, %s162
      %p171 = scmp.eq.s32.totalorder %s28, 7
      %p172 = por %p170, %p171
      %p173 = scmp.ne.s32.totalorder %s162, %s163
      %p174 = scmp.eq.s32.totalorder %s28, 0
      %p175 = por %p173, %p174
      %p176 = scmp.ne.s32.totalorder %s162, %s163
      %p177 = scmp.eq.s32.totalorder %s29, 7
      %p178 = por %p176, %p177
      %p180 = scmp.ne.s32.totalorder %s163, %s179
      %p181 = scmp.eq.s32.totalorder %s29, 0
      %p182 = por %p180, %p181
      %p183 = scmp.le.s32.totalorder 1, %s23
      %p184 = scmp.lt.s32.totalorder %s23, 9
      %p185 = pnand %p183, %p184
      %p186 = pneg %p185
      // Predicated region
      $region9: #{tpu_custom_call.1} parent=5 // pred_check
        _
      $region10: #{tpu_custom_call.1} parent=5 // pred_check_branch
        %188 = sbr.rel (%p185) target = $region12
      $region11: #{tpu_custom_call.1} parent=5 // pred_region
        %s189 = ssub.s32 %s23, 1
      $region12: #{tpu_custom_call.1} parent=5 // pred_fallthru
        _
      %p190 = scmp.lt.s32.totalorder %s23, 8
      // Predicated region
      $region13: #{tpu_custom_call.1} parent=5 // pred_check
        %p191 = pneg %p190
      $region14: #{tpu_custom_call.1} parent=5 // pred_check_branch
        %193 = sbr.rel (%p191) target = $region16
      $region15: #{tpu_custom_call.1} parent=5 // pred_region
        // Predicated region
        $region17: #{tpu_custom_call.1} parent=15 // pred_check
          %p194 = pneg %p57
        $region18: #{tpu_custom_call.1} parent=15 // pred_check_branch
          %196 = sbr.rel (%p194) target = $region20
        $region19: #{tpu_custom_call.1} parent=15 // pred_region
          %s197 = sand.u32 %s47, 1
          %s198 = scalar_lea.sflag [#allocation3], %s197
          %s199 = sand.u32 %s47, 1
          %s200 = smul.addr %s199, 4
          %s201 = scalar_lea.vmem [#allocation2], %s200
          %203 = vsyncadd %s198, 0
          %s204 = smul.addr %s30, 4
          %s205 = sadd.s32 %s31, %s204
          %s206 = smul.addr %s205, 4
          %s207 = scalar_lea.hbm %s0, %s206
          %s209 = sshll.u32 %s207, 4
          %s210 = int_to_ptr.hbm [resolvable:$true] %s209
          %s211 = sshll.u32 %s201, 4
          %s212 = int_to_ptr.vmem [resolvable:$true] %s211
          %214 = dma.hbm_to_vmem [thread:$0]  %s210, 64, %s212, %s198
        $region20: #{tpu_custom_call.1} parent=15 // pred_fallthru
          _
        // Predicated region
        $region21: #{tpu_custom_call.1} parent=15 // pred_check
          %p215 = pneg %p85
        $region22: #{tpu_custom_call.1} parent=15 // pred_check_branch
          %217 = sbr.rel (%p215) target = $region24
        $region23: #{tpu_custom_call.1} parent=15 // pred_region
          %s218 = sand.u32 %s23, 1
          %s219 = scalar_lea.sflag [#allocation6], %s218
          %s220 = sand.u32 %s75, 1
          %s221 = smul.addr %s220, 4
          %s222 = scalar_lea.vmem [#allocation5], %s221
          %224 = vsyncadd %s219, 0
          %s225 = smul.addr %s30, 4
          %s226 = sadd.s32 %s31, %s225
          %s227 = smul.addr %s226, 4
          %s228 = scalar_lea.hbm %s1, %s227
          %s230 = sshll.u32 %s228, 4
          %s231 = int_to_ptr.hbm [resolvable:$true] %s230
          %s232 = sshll.u32 %s222, 4
          %s233 = int_to_ptr.vmem [resolvable:$true] %s232
          %235 = dma.hbm_to_vmem [thread:$0]  %s231, 64, %s233, %s219
        $region24: #{tpu_custom_call.1} parent=15 // pred_fallthru
          _
        // Predicated region
        $region25: #{tpu_custom_call.1} parent=15 // pred_check
          %p236 = pneg %p113
        $region26: #{tpu_custom_call.1} parent=15 // pred_check_branch
          %238 = sbr.rel (%p236) target = $region28
        $region27: #{tpu_custom_call.1} parent=15 // pred_region
          %s239 = sand.u32 %s23, 1
          %s240 = scalar_lea.sflag [#allocation6], %s239
          %s241 = sand.u32 %s103, 1
          %s242 = smul.addr %s241, 4
          %s243 = scalar_lea.vmem [#allocation7], %s242
          %245 = vsyncadd %s240, 0
          %s246 = smul.addr %s30, 4
          %s247 = sadd.s32 %s31, %s246
          %s248 = smul.addr %s247, 4
          %s249 = scalar_lea.hbm %s2, %s248
          %s251 = sshll.u32 %s249, 4
          %s252 = int_to_ptr.hbm [resolvable:$true] %s251
          %s253 = sshll.u32 %s243, 4
          %s254 = int_to_ptr.vmem [resolvable:$true] %s253
          %256 = dma.hbm_to_vmem [thread:$0]  %s252, 64, %s254, %s240
        $region28: #{tpu_custom_call.1} parent=15 // pred_fallthru
          _
      $region16: #{tpu_custom_call.1} parent=5 // pred_fallthru
        _
      %p257 = scmp.le.s32.totalorder 1, %s23
      %p258 = scmp.lt.s32.totalorder %s23, 9
      %p259 = pnand %p257, %p258
      %p260 = pneg %p259
      // Predicated region
      $region29: #{tpu_custom_call.1} parent=5 // pred_check
        _
      $region30: #{tpu_custom_call.1} parent=5 // pred_check_branch
        %262 = sbr.rel (%p259) target = $region32
      $region31: #{tpu_custom_call.1} parent=5 // pred_region
        %s263 = ssub.s32 %s23, 1
        %s264 = sand.u32 %s50, 1
        %s265 = scalar_lea.sflag [#allocation3], %s264
        %s266 = sand.u32 %s50, 1
        %s267 = smul.addr %s266, 4
        %s268 = scalar_lea.vmem [#allocation2], %s267
        // Predicated region
        $region33: #{tpu_custom_call.1} parent=31 // pred_check
          %p269 = pneg %p63
        $region34: #{tpu_custom_call.1} parent=31 // pred_check_branch
          %271 = sbr.rel (%p269) target = $region36
        $region35: #{tpu_custom_call.1} parent=31 // pred_region
          %273 = dma.done %s265, 64
        $region36: #{tpu_custom_call.1} parent=31 // pred_fallthru
          _
        %s274 = sand.u32 %s28, 1
        %s275 = scalar_lea.sflag [#allocation6], %s274
        %s276 = sand.u32 %s78, 1
        %s277 = smul.addr %s276, 4
        %s278 = scalar_lea.vmem [#allocation5], %s277
        // Predicated region
        $region37: #{tpu_custom_call.1} parent=31 // pred_check
          %p279 = pneg %p91
        $region38: #{tpu_custom_call.1} parent=31 // pred_check_branch
          %281 = sbr.rel (%p279) target = $region40
        $region39: #{tpu_custom_call.1} parent=31 // pred_region
          %283 = dma.done %s275, 64
        $region40: #{tpu_custom_call.1} parent=31 // pred_fallthru
          _
        %s284 = sand.u32 %s28, 1
        %s285 = scalar_lea.sflag [#allocation6], %s284
        %s286 = sand.u32 %s106, 1
        %s287 = smul.addr %s286, 4
        %s288 = scalar_lea.vmem [#allocation7], %s287
        // Predicated region
        $region41: #{tpu_custom_call.1} parent=31 // pred_check
          %p289 = pneg %p119
        $region42: #{tpu_custom_call.1} parent=31 // pred_check_branch
          %291 = sbr.rel (%p289) target = $region44
        $region43: #{tpu_custom_call.1} parent=31 // pred_region
          %293 = dma.done %s285, 64
        $region44: #{tpu_custom_call.1} parent=31 // pred_fallthru
          _
        %s294 = sand.u32 %s50, 1
        %s295 = scalar_lea.sflag [#allocation3], %s294
        %s296 = sand.u32 %s50, 1
        %s297 = smul.addr %s296, 4
        %s298 = scalar_lea.vmem [#allocation2], %s297
        %p299 = pneg %p63
        %p300 = pneg %p60
        %s301 = sand.u32 %s28, 1
        %s302 = scalar_lea.sflag [#allocation6], %s301
        %s303 = sand.u32 %s78, 1
        %s304 = smul.addr %s303, 4
        %s305 = scalar_lea.vmem [#allocation5], %s304
        %p306 = pneg %p91
        %p307 = pneg %p88
        %s308 = sand.u32 %s28, 1
        %s309 = scalar_lea.sflag [#allocation6], %s308
        %s310 = sand.u32 %s106, 1
        %s311 = smul.addr %s310, 4
        %s312 = scalar_lea.vmem [#allocation7], %s311
        %p313 = pneg %p119
        %p314 = pneg %p116
        %p315 = pneg %p147
        %p316 = pneg %p144
        %s317 = sand.u32 %s134, 1
        %s318 = scalar_lea.sflag [#allocation4], %s317
        %s319 = sand.u32 %s134, 1
        %s320 = smul.addr %s319, 8
        %s321 = scalar_lea.vmem [#allocation8], %s320
        %p322 = pneg %p175
        %p323 = pneg %p172
        %s324 = sand.u32 %s162, 1
        %s325 = scalar_lea.sflag [#allocation10], %s324
        %s326 = sand.u32 %s162, 1
        %s327 = smul.addr %s326, 8
        %s328 = scalar_lea.vmem [#allocation9], %s327
        %v330 = vld [vmem:[%s268] sm:$0xf]
        %v331 = vld [vmem:[%s278] sm:$0xf]
        %vm332 = vcmask 64512
        %v334 = vsel %vm332, %v330, 0
        %vm336 = vcmask 1043456
        %v338 = vsel %vm336, %v331, 0
        %340 = vmatpush.bf16.msra.mxu0 0
        %341 = vmatpush.bf16.msra.mxu0 0
        %342 = vmatpush.bf16.msra.mxu0 0
        %343 = vmatpush.bf16.msra.mxu0 0
        %344 = vmatpush.bf16.msra.mxu0 0
        %345 = vmatpush.bf16.msra.mxu0 0
        %346 = vmatpush.bf16.msra.mxu0 0
        %347 = vmatpush.bf16.msra.mxu0 %v338
        %348 = vmatmul.bf16.gmra.mxu0 %v334
        %v349 = vpop.f32.mrf.mxu0
        %v350 = vadd.f32 0.0, %v349
        %v351 = vpop.f32.mrf.mxu0
        %352 = vdwg.mxu0
        %v353 = vxor.u32 %v350, 2147483648
        %v354 = vmul.f32 %v353, 1.442695
        %v355 = vpow.pop %v354
        %v356 = vadd.f32 %v355, 1.0
        %v357 = vrcp.pop %v356
        %v358 = vmul.f32 %v356, %v357
        %v359 = vsub.f32 1.0, %v358
        %v360 = vmul.f32 %v357, %v359
        %v361 = vadd.f32 %v357, %v360
        %vm362 = vweird.f32 %v356
        %vm363 = vweird.f32 %v357
        %vm364 = vmor %vm362, %vm363
        %v365 = vsel %vm364, %v357, %v361
        %v366 = vand.u32 2147483647, %v356
        %vm367 = vcmp.eq.f32.partialorder %v366, 8.507059e+37
        %v368 = vand.u32 %v356, 2147483648
        %v369 = vor.u32 1.1754944e-38, %v368
        %v370 = vsel %vm367, %v369, %v365
        %v371 = vmul.f32 1.0, %v370
        %v373 = vsel %vm332, 1.0, 0
        %v376 = vsel %vm332, %v371, 0
        %378 = vmatpush.xpose.msra.mxu0 0.0
        %379 = vmatpush.xpose.msra.mxu0 0.0
        %380 = vmatpush.xpose.msra.mxu0 0.0
        %381 = vmatpush.xpose.msra.mxu0 0.0
        %382 = vmatpush.xpose.msra.mxu0 0.0
        %383 = vmatpush.xpose.msra.mxu0 0.0
        %384 = vmatpush.xpose.msra.mxu0 0.0
        %385 = vmatpush.xpose.msra.mxu0 0.0
        %386 = vmatpush.xpose.msra.mxu0 0.0
        %387 = vmatpush.xpose.msra.mxu0 0.0
        %388 = vmatpush.xpose.msra.mxu0 0.0
        %389 = vmatpush.xpose.msra.mxu0 0.0
        %390 = vmatpush.xpose.msra.mxu0 0.0
        %391 = vmatpush.xpose.msra.mxu0 0.0
        %392 = vmatpush.xpose.msra.mxu0 0.0
        %393 = vmatpush.xpose.msra.mxu0 %v376
        %394 = vmatmul.f32.gmra.mxu0 %v373
        %v395 = vpop.f32.mrf.mxu0
        %v396 = vadd.f32 0.0, %v395
        %397 = vdwg.mxu0
        %v398 = vrcp.pop %v396
        %v399 = vmul.f32 %v396, %v398
        %v400 = vsub.f32 1.0, %v399
        %v401 = vmul.f32 %v398, %v400
        %v402 = vadd.f32 %v398, %v401
        %vm403 = vweird.f32 %v396
        %vm404 = vweird.f32 %v398
        %vm405 = vmor %vm403, %vm404
        %v406 = vsel %vm405, %v398, %v402
        %v407 = vand.u32 2147483647, %v396
        %vm408 = vcmp.eq.f32.partialorder %v407, 8.507059e+37
        %v409 = vand.u32 %v396, 2147483648
        %v410 = vor.u32 1.1754944e-38, %v409
        %v411 = vsel %vm408, %v410, %v406
        %v412 = vmul.f32 1.0, %v411
        %v414 = vsel %vm332, %v412, 0
        %416 = vmatpush.msra.mxu0 0.0
        %417 = vmatpush.msra.mxu0 0.0
        %418 = vmatpush.msra.mxu0 0.0
        %419 = vmatpush.msra.mxu0 0.0
        %420 = vmatpush.msra.mxu0 0.0
        %421 = vmatpush.msra.mxu0 0.0
        %422 = vmatpush.msra.mxu0 0.0
        %423 = vmatpush.msra.mxu0 0.0
        %424 = vmatpush.msra.mxu0 0.0
        %425 = vmatpush.msra.mxu0 0.0
        %426 = vmatpush.msra.mxu0 0.0
        %427 = vmatpush.msra.mxu0 0.0
        %428 = vmatpush.msra.mxu0 0.0
        %429 = vmatpush.msra.mxu0 0.0
        %430 = vmatpush.msra.mxu0 0.0
        %431 = vmatpush.msra.mxu0 %v371
        %432 = vmatmul.f32.gmra.mxu0 %v414
        %v433 = vpop.f32.mrf.mxu0
        %v434 = vadd.f32 0.0, %v433
        %435 = vdwg.mxu0
        %v436 = vrcp.pop %v434
        %v437 = vmul.f32 %v434, %v436
        %v438 = vsub.f32 1.0, %v437
        %v439 = vmul.f32 %v436, %v438
        %v440 = vadd.f32 %v436, %v439
        %vm441 = vweird.f32 %v434
        %vm442 = vweird.f32 %v436
        %vm443 = vmor %vm441, %vm442
        %v444 = vsel %vm443, %v436, %v440
        %v445 = vand.u32 2147483647, %v434
        %vm446 = vcmp.eq.f32.partialorder %v445, 8.507059e+37
        %v447 = vand.u32 %v434, 2147483648
        %v448 = vor.u32 1.1754944e-38, %v447
        %v449 = vsel %vm446, %v448, %v444
        %v450 = vmul.f32 1.0, %v449
        %v452 = vsel %vm332, %v450, 0
        %454 = vmatpush.xpose.msra.mxu0 0.0
        %455 = vmatpush.xpose.msra.mxu0 0.0
        %456 = vmatpush.xpose.msra.mxu0 0.0
        %457 = vmatpush.xpose.msra.mxu0 0.0
        %458 = vmatpush.xpose.msra.mxu0 0.0
        %459 = vmatpush.xpose.msra.mxu0 0.0
        %460 = vmatpush.xpose.msra.mxu0 0.0
        %461 = vmatpush.xpose.msra.mxu0 0.0
        %462 = vmatpush.xpose.msra.mxu0 0.0
        %463 = vmatpush.xpose.msra.mxu0 0.0
        %464 = vmatpush.xpose.msra.mxu0 0.0
        %465 = vmatpush.xpose.msra.mxu0 0.0
        %466 = vmatpush.xpose.msra.mxu0 0.0
        %467 = vmatpush.xpose.msra.mxu0 0.0
        %468 = vmatpush.xpose.msra.mxu0 0.0
        %469 = vmatpush.xpose.msra.mxu0 %v376
        %470 = vmatmul.f32.gmra.mxu0 %v452
        %v471 = vpop.f32.mrf.mxu0
        %v472 = vadd.f32 0.0, %v471
        %473 = vdwg.mxu0
        %v474 = vrcp.pop %v472
        %v475 = vmul.f32 %v472, %v474
        %v476 = vsub.f32 1.0, %v475
        %v477 = vmul.f32 %v474, %v476
        %v478 = vadd.f32 %v474, %v477
        %vm479 = vweird.f32 %v472
        %vm480 = vweird.f32 %v474
        %vm481 = vmor %vm479, %vm480
        %v482 = vsel %vm481, %v474, %v478
        %v483 = vand.u32 2147483647, %v472
        %vm484 = vcmp.eq.f32.partialorder %v483, 8.507059e+37
        %v485 = vand.u32 %v472, 2147483648
        %v486 = vor.u32 1.1754944e-38, %v485
        %v487 = vsel %vm484, %v486, %v482
        %v488 = vmul.f32 1.0, %v487
        %v490 = vsel %vm332, %v488, 0
        %492 = vmatpush.msra.mxu0 0.0
        %493 = vmatpush.msra.mxu0 0.0
        %494 = vmatpush.msra.mxu0 0.0
        %495 = vmatpush.msra.mxu0 0.0
        %496 = vmatpush.msra.mxu0 0.0
        %497 = vmatpush.msra.mxu0 0.0
        %498 = vmatpush.msra.mxu0 0.0
        %499 = vmatpush.msra.mxu0 0.0
        %500 = vmatpush.msra.mxu0 0.0
        %501 = vmatpush.msra.mxu0 0.0
        %502 = vmatpush.msra.mxu0 0.0
        %503 = vmatpush.msra.mxu0 0.0
        %504 = vmatpush.msra.mxu0 0.0
        %505 = vmatpush.msra.mxu0 0.0
        %506 = vmatpush.msra.mxu0 0.0
        %507 = vmatpush.msra.mxu0 %v371
        %508 = vmatmul.f32.gmra.mxu0 %v490
        %v509 = vpop.f32.mrf.mxu0
        %v510 = vadd.f32 0.0, %v509
        %511 = vdwg.mxu0
        %v512 = vrcp.pop %v510
        %v513 = vmul.f32 %v510, %v512
        %v514 = vsub.f32 1.0, %v513
        %v515 = vmul.f32 %v512, %v514
        %v516 = vadd.f32 %v512, %v515
        %vm517 = vweird.f32 %v510
        %vm518 = vweird.f32 %v512
        %vm519 = vmor %vm517, %vm518
        %v520 = vsel %vm519, %v512, %v516
        %v521 = vand.u32 2147483647, %v510
        %vm522 = vcmp.eq.f32.partialorder %v521, 8.507059e+37
        %v523 = vand.u32 %v510, 2147483648
        %v524 = vor.u32 1.1754944e-38, %v523
        %v525 = vsel %vm522, %v524, %v520
        %v526 = vmul.f32 1.0, %v525
        %v528 = vsel %vm332, %v526, 0
        %530 = vmatpush.xpose.msra.mxu0 0.0
        %531 = vmatpush.xpose.msra.mxu0 0.0
        %532 = vmatpush.xpose.msra.mxu0 0.0
        %533 = vmatpush.xpose.msra.mxu0 0.0
        %534 = vmatpush.xpose.msra.mxu0 0.0
        %535 = vmatpush.xpose.msra.mxu0 0.0
        %536 = vmatpush.xpose.msra.mxu0 0.0
        %537 = vmatpush.xpose.msra.mxu0 0.0
        %538 = vmatpush.xpose.msra.mxu0 0.0
        %539 = vmatpush.xpose.msra.mxu0 0.0
        %540 = vmatpush.xpose.msra.mxu0 0.0
        %541 = vmatpush.xpose.msra.mxu0 0.0
        %542 = vmatpush.xpose.msra.mxu0 0.0
        %543 = vmatpush.xpose.msra.mxu0 0.0
        %544 = vmatpush.xpose.msra.mxu0 0.0
        %545 = vmatpush.xpose.msra.mxu0 %v376
        %546 = vmatmul.f32.gmra.mxu0 %v528
        %v547 = vpop.f32.mrf.mxu0
        %v548 = vadd.f32 0.0, %v547
        %549 = vdwg.mxu0
        %v550 = vrcp.pop %v548
        %v551 = vmul.f32 %v548, %v550
        %v552 = vsub.f32 1.0, %v551
        %v553 = vmul.f32 %v550, %v552
        %v554 = vadd.f32 %v550, %v553
        %vm555 = vweird.f32 %v548
        %vm556 = vweird.f32 %v550
        %vm557 = vmor %vm555, %vm556
        %v558 = vsel %vm557, %v550, %v554
        %v559 = vand.u32 2147483647, %v548
        %vm560 = vcmp.eq.f32.partialorder %v559, 8.507059e+37
        %v561 = vand.u32 %v548, 2147483648
        %v562 = vor.u32 1.1754944e-38, %v561
        %v563 = vsel %vm560, %v562, %v558
        %v564 = vmul.f32 1.0, %v563
        %v566 = vsel %vm332, %v564, 0
        %568 = vmatpush.msra.mxu0 0.0
        %569 = vmatpush.msra.mxu0 0.0
        %570 = vmatpush.msra.mxu0 0.0
        %571 = vmatpush.msra.mxu0 0.0
        %572 = vmatpush.msra.mxu0 0.0
        %573 = vmatpush.msra.mxu0 0.0
        %574 = vmatpush.msra.mxu0 0.0
        %575 = vmatpush.msra.mxu0 0.0
        %576 = vmatpush.msra.mxu0 0.0
        %577 = vmatpush.msra.mxu0 0.0
        %578 = vmatpush.msra.mxu0 0.0
        %579 = vmatpush.msra.mxu0 0.0
        %580 = vmatpush.msra.mxu0 0.0
        %581 = vmatpush.msra.mxu0 0.0
        %582 = vmatpush.msra.mxu0 0.0
        %583 = vmatpush.msra.mxu0 %v371
        %584 = vmatmul.f32.gmra.mxu0 %v566
        %v585 = vpop.f32.mrf.mxu0
        %v586 = vadd.f32 0.0, %v585
        %587 = vdwg.mxu0
        %v588 = vrcp.pop %v586
        %v589 = vmul.f32 %v586, %v588
        %v590 = vsub.f32 1.0, %v589
        %v591 = vmul.f32 %v588, %v590
        %v592 = vadd.f32 %v588, %v591
        %vm593 = vweird.f32 %v586
        %vm594 = vweird.f32 %v588
        %vm595 = vmor %vm593, %vm594
        %v596 = vsel %vm595, %v588, %v592
        %v597 = vand.u32 2147483647, %v586
        %vm598 = vcmp.eq.f32.partialorder %v597, 8.507059e+37
        %v599 = vand.u32 %v586, 2147483648
        %v600 = vor.u32 1.1754944e-38, %v599
        %v601 = vsel %vm598, %v600, %v596
        %v602 = vmul.f32 1.0, %v601
        %v604 = vsel %vm332, %v602, 0
        %606 = vmatpush.xpose.msra.mxu0 0.0
        %607 = vmatpush.xpose.msra.mxu0 0.0
        %608 = vmatpush.xpose.msra.mxu0 0.0
        %609 = vmatpush.xpose.msra.mxu0 0.0
        %610 = vmatpush.xpose.msra.mxu0 0.0
        %611 = vmatpush.xpose.msra.mxu0 0.0
        %612 = vmatpush.xpose.msra.mxu0 0.0
        %613 = vmatpush.xpose.msra.mxu0 0.0
        %614 = vmatpush.xpose.msra.mxu0 0.0
        %615 = vmatpush.xpose.msra.mxu0 0.0
        %616 = vmatpush.xpose.msra.mxu0 0.0
        %617 = vmatpush.xpose.msra.mxu0 0.0
        %618 = vmatpush.xpose.msra.mxu0 0.0
        %619 = vmatpush.xpose.msra.mxu0 0.0
        %620 = vmatpush.xpose.msra.mxu0 0.0
        %621 = vmatpush.xpose.msra.mxu0 %v376
        %622 = vmatmul.f32.gmra.mxu0 %v604
        %v623 = vpop.f32.mrf.mxu0
        %v624 = vadd.f32 0.0, %v623
        %625 = vdwg.mxu0
        %v626 = vrcp.pop %v624
        %v627 = vmul.f32 %v624, %v626
        %v628 = vsub.f32 1.0, %v627
        %v629 = vmul.f32 %v626, %v628
        %v630 = vadd.f32 %v626, %v629
        %vm631 = vweird.f32 %v624
        %vm632 = vweird.f32 %v626
        %vm633 = vmor %vm631, %vm632
        %v634 = vsel %vm633, %v626, %v630
        %v635 = vand.u32 2147483647, %v624
        %vm636 = vcmp.eq.f32.partialorder %v635, 8.507059e+37
        %v637 = vand.u32 %v624, 2147483648
        %v638 = vor.u32 1.1754944e-38, %v637
        %v639 = vsel %vm636, %v638, %v634
        %v640 = vmul.f32 1.0, %v639
        %v642 = vsel %vm332, %v640, 0
        %644 = vmatpush.msra.mxu0 0.0
        %645 = vmatpush.msra.mxu0 0.0
        %646 = vmatpush.msra.mxu0 0.0
        %647 = vmatpush.msra.mxu0 0.0
        %648 = vmatpush.msra.mxu0 0.0
        %649 = vmatpush.msra.mxu0 0.0
        %650 = vmatpush.msra.mxu0 0.0
        %651 = vmatpush.msra.mxu0 0.0
        %652 = vmatpush.msra.mxu0 0.0
        %653 = vmatpush.msra.mxu0 0.0
        %654 = vmatpush.msra.mxu0 0.0
        %655 = vmatpush.msra.mxu0 0.0
        %656 = vmatpush.msra.mxu0 0.0
        %657 = vmatpush.msra.mxu0 0.0
        %658 = vmatpush.msra.mxu0 0.0
        %659 = vmatpush.msra.mxu0 %v371
        %660 = vmatmul.f32.gmra.mxu0 %v642
        %v661 = vpop.f32.mrf.mxu0
        %v662 = vadd.f32 0.0, %v661
        %663 = vdwg.mxu0
        %v664 = vrcp.pop %v662
        %v665 = vmul.f32 %v662, %v664
        %v666 = vsub.f32 1.0, %v665
        %v667 = vmul.f32 %v664, %v666
        %v668 = vadd.f32 %v664, %v667
        %vm669 = vweird.f32 %v662
        %vm670 = vweird.f32 %v664
        %vm671 = vmor %vm669, %vm670
        %v672 = vsel %vm671, %v664, %v668
        %v673 = vand.u32 2147483647, %v662
        %vm674 = vcmp.eq.f32.partialorder %v673, 8.507059e+37
        %v675 = vand.u32 %v662, 2147483648
        %v676 = vor.u32 1.1754944e-38, %v675
        %v677 = vsel %vm674, %v676, %v672
        %v678 = vmul.f32 1.0, %v677
        %v680 = vsel %vm332, %v678, 0
        %682 = vmatpush.xpose.msra.mxu0 0.0
        %683 = vmatpush.xpose.msra.mxu0 0.0
        %684 = vmatpush.xpose.msra.mxu0 0.0
        %685 = vmatpush.xpose.msra.mxu0 0.0
        %686 = vmatpush.xpose.msra.mxu0 0.0
        %687 = vmatpush.xpose.msra.mxu0 0.0
        %688 = vmatpush.xpose.msra.mxu0 0.0
        %689 = vmatpush.xpose.msra.mxu0 0.0
        %690 = vmatpush.xpose.msra.mxu0 0.0
        %691 = vmatpush.xpose.msra.mxu0 0.0
        %692 = vmatpush.xpose.msra.mxu0 0.0
        %693 = vmatpush.xpose.msra.mxu0 0.0
        %694 = vmatpush.xpose.msra.mxu0 0.0
        %695 = vmatpush.xpose.msra.mxu0 0.0
        %696 = vmatpush.xpose.msra.mxu0 0.0
        %697 = vmatpush.xpose.msra.mxu0 %v376
        %698 = vmatmul.f32.gmra.mxu0 %v680
        %v699 = vpop.f32.mrf.mxu0
        %v700 = vadd.f32 0.0, %v699
        %701 = vdwg.mxu0
        %v702 = vrcp.pop %v700
        %v703 = vmul.f32 %v700, %v702
        %v704 = vsub.f32 1.0, %v703
        %v705 = vmul.f32 %v702, %v704
        %v706 = vadd.f32 %v702, %v705
        %vm707 = vweird.f32 %v700
        %vm708 = vweird.f32 %v702
        %vm709 = vmor %vm707, %vm708
        %v710 = vsel %vm709, %v702, %v706
        %v711 = vand.u32 2147483647, %v700
        %vm712 = vcmp.eq.f32.partialorder %v711, 8.507059e+37
        %v713 = vand.u32 %v700, 2147483648
        %v714 = vor.u32 1.1754944e-38, %v713
        %v715 = vsel %vm712, %v714, %v710
        %v716 = vmul.f32 1.0, %v715
        %v718 = vsel %vm332, %v716, 0
        %720 = vmatpush.msra.mxu0 0.0
        %721 = vmatpush.msra.mxu0 0.0
        %722 = vmatpush.msra.mxu0 0.0
        %723 = vmatpush.msra.mxu0 0.0
        %724 = vmatpush.msra.mxu0 0.0
        %725 = vmatpush.msra.mxu0 0.0
        %726 = vmatpush.msra.mxu0 0.0
        %727 = vmatpush.msra.mxu0 0.0
        %728 = vmatpush.msra.mxu0 0.0
        %729 = vmatpush.msra.mxu0 0.0
        %730 = vmatpush.msra.mxu0 0.0
        %731 = vmatpush.msra.mxu0 0.0
        %732 = vmatpush.msra.mxu0 0.0
        %733 = vmatpush.msra.mxu0 0.0
        %734 = vmatpush.msra.mxu0 0.0
        %735 = vmatpush.msra.mxu0 %v371
        %736 = vmatmul.f32.gmra.mxu0 %v718
        %v737 = vpop.f32.mrf.mxu0
        %v738 = vadd.f32 0.0, %v737
        %739 = vdwg.mxu0
        %v740 = vrcp.pop %v738
        %v741 = vmul.f32 %v738, %v740
        %v742 = vsub.f32 1.0, %v741
        %v743 = vmul.f32 %v740, %v742
        %v744 = vadd.f32 %v740, %v743
        %vm745 = vweird.f32 %v738
        %vm746 = vweird.f32 %v740
        %vm747 = vmor %vm745, %vm746
        %v748 = vsel %vm747, %v740, %v744
        %v749 = vand.u32 2147483647, %v738
        %vm750 = vcmp.eq.f32.partialorder %v749, 8.507059e+37
        %v751 = vand.u32 %v738, 2147483648
        %v752 = vor.u32 1.1754944e-38, %v751
        %v753 = vsel %vm750, %v752, %v748
        %v754 = vmul.f32 1.0, %v753
        %v755 = vperm.slane %v678, 0
        %v756 = vmul.f32 %v371, %v755
        %v757 = vsel %vm332, %v756, 0.0
        %758 = vadd.xlane.f32.xlu0 %v757
        %v759 = vpop.xlane.xlu0 %758
        %v760 = vrcp.pop %v759
        %v761 = vmul.f32 %v759, %v760
        %v762 = vsub.f32 1.0, %v761
        %v763 = vmul.f32 %v760, %v762
        %v764 = vadd.f32 %v760, %v763
        %vm765 = vweird.f32 %v759
        %vm766 = vweird.f32 %v760
        %vm767 = vmor %vm765, %vm766
        %v768 = vsel %vm767, %v760, %v764
        %v769 = vand.u32 2147483647, %v759
        %vm770 = vcmp.eq.f32.partialorder %v769, 8.507059e+37
        %v771 = vand.u32 %v759, 2147483648
        %v772 = vor.u32 1.1754944e-38, %v771
        %v773 = vsel %vm770, %v772, %v768
        %v774 = vmul.f32 1.0, %v773
        %v775 = vperm.slane %v754, 0
        %v776 = vmul.f32 %v371, %v775
        %v777 = vmul.f32 %v776, %v774
        %778 = vst.msk [vmem:[%s321] sm:$0xff] %vm332, %v777
        %v779 = vpack.c.bf16 %v777, %v777
        %v780 = vld [vmem:[%s288] sm:$0xf]
        %v782 = vsel %vm332, %v779, 0
        %v785 = vsel %vm336, %v780, 0
        %787 = vmatpush.bf16.msra.mxu0 0
        %788 = vmatpush.bf16.msra.mxu0 0
        %789 = vmatpush.bf16.msra.mxu0 0
        %790 = vmatpush.bf16.msra.mxu0 0
        %791 = vmatpush.bf16.msra.mxu0 0
        %792 = vmatpush.bf16.msra.mxu0 0
        %793 = vmatpush.bf16.msra.mxu0 0
        %794 = vmatpush.bf16.msra.mxu0 %v785
        %795 = vmatmul.bf16.gmra.mxu0 %v782
        %v796 = vpop.f32.mrf.mxu0
        %v797 = vadd.f32 0.0, %v796
        %v798 = vpop.f32.mrf.mxu0
        %799 = vdwg.mxu0
        %800 = vst.msk [vmem:[%s328] sm:$0xff] %vm332, %v797
        %s801 = sand.u32 %s134, 1
        %s802 = scalar_lea.sflag [#allocation4], %s801
        %s803 = sand.u32 %s134, 1
        %s804 = smul.addr %s803, 8
        %s805 = scalar_lea.vmem [#allocation8], %s804
        %s806 = sand.u32 %s162, 1
        %s807 = scalar_lea.sflag [#allocation10], %s806
        %s808 = sand.u32 %s162, 1
        %s809 = smul.addr %s808, 8
        %s810 = scalar_lea.vmem [#allocation9], %s809
        // Predicated region
        $region45: #{tpu_custom_call.1} parent=31 // pred_check
          %p811 = pneg %p144
        $region46: #{tpu_custom_call.1} parent=31 // pred_check_branch
          %813 = sbr.rel (%p811) target = $region48
        $region47: #{tpu_custom_call.1} parent=31 // pred_region
          %815 = vsyncadd %s802, 0
          %s816 = smul.addr %s32, 4
          %s817 = sadd.s32 %s33, %s816
          %s818 = smul.addr %s817, 8
          %s819 = scalar_lea.hbm %s3, %s818
          %s821 = sshll.u32 %s805, 4
          %s822 = int_to_ptr.vmem [resolvable:$true] %s821
          %s823 = sshll.u32 %s819, 4
          %s824 = int_to_ptr.hbm [resolvable:$true] %s823
          %826 = dma.vmem_to_hbm [thread:$0]  %s822, 128, %s824, %s802
        $region48: #{tpu_custom_call.1} parent=31 // pred_fallthru
          _
        // Predicated region
        $region49: #{tpu_custom_call.1} parent=31 // pred_check
          %p827 = pneg %p172
        $region50: #{tpu_custom_call.1} parent=31 // pred_check_branch
          %829 = sbr.rel (%p827) target = $region52
        $region51: #{tpu_custom_call.1} parent=31 // pred_region
          %831 = vsyncadd %s807, 0
          %s832 = smul.addr %s32, 4
          %s833 = sadd.s32 %s33, %s832
          %s834 = smul.addr %s833, 8
          %s835 = scalar_lea.hbm %s4, %s834
          %s837 = sshll.u32 %s810, 4
          %s838 = int_to_ptr.vmem [resolvable:$true] %s837
          %s839 = sshll.u32 %s835, 4
          %s840 = int_to_ptr.hbm [resolvable:$true] %s839
          %842 = dma.vmem_to_hbm [thread:$0]  %s838, 128, %s840, %s807
        $region52: #{tpu_custom_call.1} parent=31 // pred_fallthru
          _
      $region32: #{tpu_custom_call.1} parent=5 // pred_fallthru
        _
      %p843 = scmp.le.s32.totalorder 2, %s23
      // Predicated region
      $region53: #{tpu_custom_call.1} parent=5 // pred_check
        %p844 = pneg %p843
      $region54: #{tpu_custom_call.1} parent=5 // pred_check_branch
        %846 = sbr.rel (%p844) target = $region56
      $region55: #{tpu_custom_call.1} parent=5 // pred_region
        %s847 = ssub.s32 %s23, 2
        // Predicated region
        $region57: #{tpu_custom_call.1} parent=55 // pred_check
          %p848 = pneg %p150
        $region58: #{tpu_custom_call.1} parent=55 // pred_check_branch
          %850 = sbr.rel (%p848) target = $region60
        $region59: #{tpu_custom_call.1} parent=55 // pred_region
          %s851 = sand.u32 %s135, 1
          %s852 = scalar_lea.sflag [#allocation4], %s851
          %s853 = sand.u32 %s135, 1
          %s854 = smul.addr %s853, 8
          %s855 = scalar_lea.vmem [#allocation8], %s854
          %857 = dma.done %s852, 128
        $region60: #{tpu_custom_call.1} parent=55 // pred_fallthru
          _
        // Predicated region
        $region61: #{tpu_custom_call.1} parent=55 // pred_check
          %p858 = pneg %p178
        $region62: #{tpu_custom_call.1} parent=55 // pred_check_branch
          %860 = sbr.rel (%p858) target = $region64
        $region63: #{tpu_custom_call.1} parent=55 // pred_region
          %s861 = sand.u32 %s163, 1
          %s862 = scalar_lea.sflag [#allocation10], %s861
          %s863 = sand.u32 %s163, 1
          %s864 = smul.addr %s863, 8
          %s865 = scalar_lea.vmem [#allocation9], %s864
          %867 = dma.done %s862, 128
        $region64: #{tpu_custom_call.1} parent=55 // pred_fallthru
          _
      $region56: #{tpu_custom_call.1} parent=5 // pred_fallthru
        _
    $region6: #{tpu_custom_call.1} parent=1 // loop_footer
      %s27 = sadd.s32 1, %s23
    $region7: #{tpu_custom_call.1} parent=1 // loop_footer_branch
      %22 = sbr.rel target = $region3
    $region8: #{tpu_custom_call.1} parent=1 // loop_exit
      _
    %868 = vsyncpa [#allocation3], 1
    %s869 = scalar_lea.sflag [#allocation3], 1
    %870 = vsyncpa %s869, 1
    %871 = vsyncpa [#allocation6], 1
    %s872 = scalar_lea.sflag [#allocation6], 1
    %873 = vsyncpa %s872, 1
    %874 = vsyncpa [#allocation4], 1
    %s875 = scalar_lea.sflag [#allocation4], 1
    %876 = vsyncpa %s875, 1
    %877 = vsyncpa [#allocation10], 1
    %s878 = scalar_lea.sflag [#allocation10], 1
    %879 = vsyncpa %s878, 1

</llo_original>
